<compile_context>
chip_gen: v5e
topology: v5e:2x2
jax: 0.10.0
libtpu: 0.0.40
codegen_flags: <defaults>
</compile_context>

<pallas_src>
import functools
import math

import jax
import jax.numpy as jnp
from jax import lax
from jax.experimental import pallas as pl
from jax.experimental.pallas import tpu as pltpu

LANE = 128
SUBLANE = 8
TARGET_TILE_BYTES = 4 * 1024 * 1024   # ~4 MiB per input pipeline buffer
VMEM_LIMIT_CAP = 48 * 1024 * 1024     # < 64 MiB physical VMEM/TC on v7x


def _round_up(a, b):
    return ((a + b - 1) // b) * b


def _round_down(a, b):
    return (a // b) * b


def _num_parallel_chunks():
    """2 on multi-TensorCore chips (v7x); 1 on single-TC chips (v5e/v6e)."""
    try:
        kind = jax.devices()[0].device_kind.lower()
    except Exception:
        return 1
    return 2 if ("v7" in kind or "7x" in kind) else 1


def _mse_partial_kernel(x_ref, y_ref, acc_ref, *, tile_rows, steps, valid_rows,
                        needs_mask):
    """Accumulate sum((x - y)^2) of one (tile_rows, W) tile into the resident
    (SUBLANE, W) f32 output block of this chunk."""
    c = pl.program_id(0)   # parallel chunk axis
    k = pl.program_id(1)   # sequential reduction axis

    @pl.when(k == 0)
    def _():
        acc_ref[...] = jnp.zeros_like(acc_ref)

    def accumulate(masked):
        d = x_ref[...].astype(jnp.float32) - y_ref[...].astype(jnp.float32)
        if masked:
            # Zero rows beyond the valid row range: covers the partial edge
            # block and any phantom block of the chunk split (whose garbage
            # rows may even be NaN; jnp.where discards them).
            g = c * steps + k  # UNclamped global block index
            row = lax.broadcasted_iota(jnp.int32, d.shape, 0)
            d = jnp.where(g * tile_rows + row < valid_rows, d, 0.0)
        sq = d * d
        # (tile_rows, W) -> (tile_rows//8, 8, W); summing axis 0 is pure
        # per-vreg VPU adds (no cross-lane/XLU work per iteration).
        acc_ref[...] += sq.reshape(tile_rows // SUBLANE, SUBLANE, -1).sum(axis=0)

    if needs_mask:
        g = c * steps + k
        is_edge = (g + 1) * tile_rows > valid_rows  # partial or phantom block

        @pl.when(is_edge)
        def _():
            accumulate(masked=True)

        @pl.when(jnp.logical_not(is_edge))
        def _():
            accumulate(masked=False)
    else:
        accumulate(masked=False)


def custom_loss(x, y, *, tile_bytes=TARGET_TILE_BYTES, num_chunks=None):
    """Pallas equivalent of CustomLoss.forward: mean((x - y) ** 2)."""
    assert x.shape == y.shape, "x and y must have the same shape"
    n = x.size
    assert n > 0

    itemsize_x = jnp.dtype(x.dtype).itemsize
    itemsize_y = jnp.dtype(y.dtype).itemsize
    max_itemsize = max(itemsize_x, itemsize_y)
    # Packed sublane count of the narrowest dtype (f32:8, bf16:16, int8/fp8:32).
    pack = max(SUBLANE, 32 // max(1, min(itemsize_x, itemsize_y, 4)))

    direct = x.ndim >= 2
    if direct:
        lead = int(math.prod(x.shape[:-1]))
        width = int(x.shape[-1])
        w_phys = _round_up(width, LANE)
        # Need at least 8 rows and an 8-row tile that fits the byte budget.
        direct = (lead >= SUBLANE) and (SUBLANE * w_phys * max_itemsize <= tile_bytes)

    if direct:
        # Layout-preserving collapse of leading dims: no wrapper-side
        # relayout/pad copy for tile-aligned trailing dims (the common case);
        # the kernel streams the array as it already sits in HBM.
        x2d = x.reshape(lead, width)
        y2d = y.reshape(lead, width)
    else:
        # Fallback (0-D / 1-D / tiny or pathological shapes): flatten to a
        # lane-dense [rows, 128] slab, zero-padding only the ragged tail
        # (padded zeros contribute (0 - 0)^2 = 0 to the sum).
        xf = x.reshape(-1)
        yf = y.reshape(-1)
        rows = _round_up(pl.cdiv(n, LANE), pack)
        pad = rows * LANE - n
        if pad > 0:
            xf = jnp.pad(xf, (0, pad))
            yf = jnp.pad(yf, (0, pad))
        x2d = xf.reshape(rows, LANE)
        y2d = yf.reshape(rows, LANE)

    R, W2 = x2d.shape
    w_phys = _round_up(W2, LANE)

    # Tile rows: as big as the byte budget allows, aligned to the dtype's
    # packed sublane count, never exceeding the (aligned) row count.
    row_align = pack if R >= pack else SUBLANE
    budget_rows = max(row_align,
                      _round_down(tile_bytes // (w_phys * max_itemsize), row_align))
    rows_cap = max(row_align, _round_down(R, row_align))
    tile_rows = min(budget_rows, rows_cap)

    total_blocks = pl.cdiv(R, tile_rows)
    if num_chunks is None:
        num_chunks = _num_parallel_chunks()
    num_chunks = num_chunks if total_blocks >= num_chunks else 1
    steps = pl.cdiv(total_blocks, num_chunks)

    # Mask needed iff the (num_chunks x steps) grid covers rows beyond R
    # (partial edge block and/or phantom blocks of the chunk split).
    needs_mask = (num_chunks * steps * tile_rows) != R
    last_block = total_blocks - 1

    def in_index_map(c, k):
        g = c * steps + k
        if needs_mask:
            # Phantom blocks (num_chunks*steps > total_blocks) re-read the
            # last real block; the in-kernel row mask zeroes their contribution.
            g = jnp.minimum(g, last_block)
        return (g, 0)

    kernel = functools.partial(
        _mse_partial_kernel,
        tile_rows=tile_rows,
        steps=steps,
        valid_rows=R,
        needs_mask=needs_mask,
    )

    # Explicit scoped-VMEM limit: 2 pipeline buffers per input + headroom.
    # Required on v5e (16 MiB scoped default) for 4 MiB tiles; safe everywhere
    # (cap 48 MiB < 64 MiB physical VMEM per TensorCore on v7x).
    buf_bytes = 2 * tile_rows * w_phys * (itemsize_x + itemsize_y)
    vmem_limit = int(min(max(buf_bytes + (8 << 20), 32 << 20), VMEM_LIMIT_CAP))

    partials = pl.pallas_call(
        kernel,
        out_shape=jax.ShapeDtypeStruct((num_chunks * SUBLANE, W2), jnp.float32),
        grid_spec=pltpu.PrefetchScalarGridSpec(
            num_scalar_prefetch=0,
            grid=(num_chunks, steps),
            in_specs=[
                pl.BlockSpec((tile_rows, W2), in_index_map),
                pl.BlockSpec((tile_rows, W2), in_index_map),
            ],
            out_specs=pl.BlockSpec((SUBLANE, W2), lambda c, k: (c, 0)),
        ),
        compiler_params=pltpu.CompilerParams(
            dimension_semantics=("parallel", "arbitrary"),
            vmem_limit_bytes=vmem_limit,
        ),
    )(x2d, y2d)

    # Single final cross-lane reduction + divide-by-n, once, outside the kernel.
    return jnp.sum(partials) / n


if __name__ == "__main__":
    def ref_loss(a, b):
        return jnp.mean((a.astype(jnp.float32) - b.astype(jnp.float32)) ** 2)

    # Main check: small shape consistent with the module (batch=2, channels=4,
    # 16x16 spatial). Direct path, non-128 lane width, single unmasked block.
    kx, ky = jax.random.split(jax.random.PRNGKey(0))
    x = jax.random.normal(kx, (2, 4, 16, 16), dtype=jnp.float32)
    y = jax.random.normal(ky, (2, 4, 16, 16), dtype=jnp.float32)
    loss = custom_loss(x, y)
    jax.block_until_ready(loss)
    r = ref_loss(x, y)
    assert jnp.allclose(loss, r, rtol=1e-5, atol=1e-6), (loss, r)

    # Multi-block + partial edge block + phantom block (2 parallel chunks,
    # 3 real blocks) exercised via a small tile budget so shapes stay small.
    kx2, ky2 = jax.random.split(jax.random.PRNGKey(1))
    x2 = jax.random.normal(kx2, (3, 100, 128), dtype=jnp.float32)
    y2 = jax.random.normal(ky2, (3, 100, 128), dtype=jnp.float32)
    loss2 = custom_loss(x2, y2, tile_bytes=64 * 1024, num_chunks=2)
    jax.block_until_ready(loss2)
    r2 = ref_loss(x2, y2)
    assert jnp.allclose(loss2, r2, rtol=1e-4, atol=1e-6), (loss2, r2)

    # Ragged trailing width (W=7) -> direct path with partial edge rows + mask.
    kx3, ky3 = jax.random.split(jax.random.PRNGKey(2))
    x3 = jax.random.normal(kx3, (3, 5, 7), dtype=jnp.float32)
    y3 = jax.random.normal(ky3, (3, 5, 7), dtype=jnp.float32)
    loss3 = custom_loss(x3, y3)
    jax.block_until_ready(loss3)
    r3 = ref_loss(x3, y3)
    assert jnp.allclose(loss3, r3, rtol=1e-5, atol=1e-6), (loss3, r3)

    # 1-D ragged input -> flatten + tail-pad fallback path.
    kx4, ky4 = jax.random.split(jax.random.PRNGKey(3))
    x4 = jax.random.normal(kx4, (1000,), dtype=jnp.float32)
    y4 = jax.random.normal(ky4, (1000,), dtype=jnp.float32)
    loss4 = custom_loss(x4, y4)
    jax.block_until_ready(loss4)
    r4 = ref_loss(x4, y4)
    assert jnp.allclose(loss4, r4, rtol=1e-5, atol=1e-6), (loss4, r4)

    # bf16 inputs -> packed sublane alignment (16) + in-kernel f32 cast.
    kx5, ky5 = jax.random.split(jax.random.PRNGKey(4))
    x5 = jax.random.normal(kx5, (2, 4, 16, 16), dtype=jnp.float32).astype(jnp.bfloat16)
    y5 = jax.random.normal(ky5, (2, 4, 16, 16), dtype=jnp.float32).astype(jnp.bfloat16)
    loss5 = custom_loss(x5, y5)
    jax.block_until_ready(loss5)
    r5 = ref_loss(x5, y5)
    assert jnp.allclose(loss5, r5, rtol=1e-5, atol=1e-6), (loss5, r5)

    print("KERNEL_OK")
</pallas_src>

<mosaic_0001>
module attributes {stable_mosaic.version = 11 : i64} {
  func.func @_mse_partial_kernel(%arg0: i32, %arg1: i32, %arg2: memref<128x16xf32, #tpu.memory_space<vmem>>, %arg3: memref<128x16xf32, #tpu.memory_space<vmem>>, %arg4: memref<8x16xf32, #tpu.memory_space<vmem>>) attributes {dimension_semantics = [#tpu.dimension_semantics<parallel>, #tpu.dimension_semantics<arbitrary>], iteration_bounds = array<i64: 1, 1>, scalar_prefetch = 0 : i64, scratch_operands = 0 : i64, tpu.core_type = #tpu.core_type<tc>, window_params = [{transform_indices = @transform_0, window_bounds = array<i64: 128, 16>}, {transform_indices = @transform_1, window_bounds = array<i64: 128, 16>}, {transform_indices = @transform_2, window_bounds = array<i64: 8, 16>}]} {
    %c0_i32 = arith.constant 0 : i32
    %0 = arith.cmpi eq, %arg1, %c0_i32 : i32
    %1 = arith.extui %0 : i1 to i32
    %c0_i32_0 = arith.constant 0 : i32
    %2 = arith.cmpi ne, %1, %c0_i32_0 : i32
    scf.if %2 {
      %cst_8 = arith.constant 0.000000e+00 : f32
      %12 = vector.broadcast %cst_8 : f32 to vector<8x16xf32>
      %c0_9 = arith.constant 0 : index
      %c0_10 = arith.constant 0 : index
      %13 = vector.load %arg4[%c0_9, %c0_10] : memref<8x16xf32, #tpu.memory_space<vmem>>, vector<8x16xf32>
      tpu.vector_store %arg4[%c0_9, %c0_10], %12 {strides = array<i32>} : memref<8x16xf32, #tpu.memory_space<vmem>>, vector<8x16xf32>,
    } else {
    }
    %c0 = arith.constant 0 : index
    %c0_1 = arith.constant 0 : index
    %3 = vector.load %arg2[%c0, %c0_1] : memref<128x16xf32, #tpu.memory_space<vmem>>, vector<128x16xf32>
    %c0_2 = arith.constant 0 : index
    %c0_3 = arith.constant 0 : index
    %4 = vector.load %arg3[%c0_2, %c0_3] : memref<128x16xf32, #tpu.memory_space<vmem>>, vector<128x16xf32>
    %5 = arith.subf %3, %4 : vector<128x16xf32>
    %6 = arith.mulf %5, %5 : vector<128x16xf32>
    %c0_4 = arith.constant 0 : index
    %c0_5 = arith.constant 0 : index
    %7 = vector.load %arg4[%c0_4, %c0_5] : memref<8x16xf32, #tpu.memory_space<vmem>>, vector<8x16xf32>
    %8 = vector.shape_cast %6 : vector<128x16xf32> to vector<16x8x16xf32>
    %cst = arith.constant dense<0.000000e+00> : vector<8x16xf32>
    %9 = vector.multi_reduction <add>, %8, %cst [0] : vector<16x8x16xf32> to vector<8x16xf32>
    %10 = arith.addf %7, %9 : vector<8x16xf32>
    %c0_6 = arith.constant 0 : index
    %c0_7 = arith.constant 0 : index
    %11 = vector.load %arg4[%c0_6, %c0_7] : memref<8x16xf32, #tpu.memory_space<vmem>>, vector<8x16xf32>
    tpu.vector_store %arg4[%c0_6, %c0_7], %10 {strides = array<i32>} : memref<8x16xf32, #tpu.memory_space<vmem>>, vector<8x16xf32>,
    return
  }
  func.func @transform_0(%arg0: i32, %arg1: i32) -> (i32, i32) {
    %c1_i32 = arith.constant 1 : i32
    %0 = arith.muli %arg0, %c1_i32 : i32
    %1 = arith.addi %0, %arg1 : i32
    %c0_i32 = arith.constant 0 : i32
    %c0_i32_0 = arith.constant 0 : i32
    return %1, %c0_i32 : i32, i32
  }
  func.func @transform_1(%arg0: i32, %arg1: i32) -> (i32, i32) {
    %c1_i32 = arith.constant 1 : i32
    %0 = arith.muli %arg0, %c1_i32 : i32
    %1 = arith.addi %0, %arg1 : i32
    %c0_i32 = arith.constant 0 : i32
    %c0_i32_0 = arith.constant 0 : i32
    return %1, %c0_i32 : i32, i32
  }
  func.func @transform_2(%arg0: i32, %arg1: i32) -> (i32, i32) {
    %c0_i32 = arith.constant 0 : i32
    %c0_i32_0 = arith.constant 0 : i32
    return %arg0, %c0_i32 : i32, i32
  }
}

</mosaic_0001>

<llo_original>
// kernel: tpu_custom_call.1
$region0: #{tpu_custom_call.1}
  #allocation0 [shape = 'u32[]', space=smem, size = 0x4, offset = 0x4, fixed_abs, tag = 'smem constant byte address 0x4 - core index']
  #allocation1 [shape = 'u32[72,128]{1,0:T(1,128)}', space=vmem, size = 0x9000, scoped, tag = 'internal scratch']
  %s0 = inlined_call_operand.vmem [shape: f32[128,16], index: 0, kind: input, shape index: {}]
  %s1 = inlined_call_operand.vmem [shape: f32[128,16], index: 1, kind: input, shape index: {}]
  %s2 = inlined_call_operand.hbm [shape: f32[8,16], index: 2, kind: output, shape index: {}]
  %s3 = sld [smem:[#allocation0]]
  $region22: #{tpu_custom_call.1} parent=0
    _
  %s5 = ssub.s32 1, %s3
  %s6 = scalar_select 0, %s5, %s3
  $region1: #{tpu_custom_call.1} parent=0
    #allocation2 [shape = 'u8[4096]{0}', space=vmem, size = 0x1000, scoped, tag = 'output window, operand 0, single buffered']
    #allocation3 [shape = 's32[1]{0}', space=sflag, size = 0x4, scoped, tag = 'scoped memory for tpu_custom_call.1']
    %7 = vsyncpa [#allocation3], 0
    // Predicated region
    $region2: #{tpu_custom_call.1} parent=1 // pred_check
      _
    $region3: #{tpu_custom_call.1} parent=1 // pred_check_branch
      %9 = sbr.rel (0) target = $region5
    $region4: #{tpu_custom_call.1} parent=1 // pred_region
      %s10 = sadd.s32 0, 0
      %s11 = smul.u32 16, %s10
      %p12 = scmp.lt.s32.totalorder %s11, 15
      %s13 = scalar_select %p12, %s11, 15
      %s14 = smul.addr %s13, 8
      %s15 = scalar_lea.vmem %s0, %s14
      %s16 = sadd.s32 0, 0
      %s17 = smul.u32 16, %s16
    $region5: #{tpu_custom_call.1} parent=1 // pred_fallthru
      _
    // Predicated region
    $region6: #{tpu_custom_call.1} parent=1 // pred_check
      _
    $region7: #{tpu_custom_call.1} parent=1 // pred_check_branch
      %19 = sbr.rel (0) target = $region9
    $region8: #{tpu_custom_call.1} parent=1 // pred_region
      %s20 = sadd.s32 0, 0
      %s21 = smul.u32 16, %s20
      %p22 = scmp.lt.s32.totalorder %s21, 15
      %s23 = scalar_select %p22, %s21, 15
      %s24 = smul.addr %s23, 8
      %s25 = scalar_lea.vmem %s1, %s24
      %s26 = sadd.s32 0, 0
      %s27 = smul.u32 16, %s26
    $region9: #{tpu_custom_call.1} parent=1 // pred_fallthru
      _
    %s28 = sadd.s32 0, 0
    %s29 = smul.u32 16, %s28
    %p30 = scmp.lt.s32.totalorder %s29, 15
    %s31 = scalar_select %p30, %s29, 15
    %s32 = smul.addr %s31, 8
    %s33 = scalar_lea.vmem %s0, %s32
    %s34 = sadd.s32 0, 0
    %s35 = smul.u32 16, %s34
    %p36 = scmp.lt.s32.totalorder %s35, 15
    %s37 = scalar_select %p36, %s35, 15
    %s38 = smul.addr %s37, 8
    %s39 = scalar_lea.vmem %s1, %s38
    %s40 = sadd.s32 0, 0
    %s41 = smul.u32 16, %s40
    %p42 = scmp.lt.s32.totalorder %s41, 15
    %s43 = scalar_select %p42, %s41, 15
    %s44 = smul.addr %s43, 8
    %s45 = scalar_lea.vmem %s0, %s44
    %s46 = sadd.s32 0, 0
    %s47 = smul.u32 16, %s46
    %s48 = sadd.s32 0, 0
    %s49 = smul.u32 16, %s48
    %p50 = scmp.lt.s32.totalorder %s49, 15
    %s51 = scalar_select %p50, %s49, 15
    %s52 = smul.addr %s51, 8
    %s53 = scalar_lea.vmem %s1, %s52
    %s54 = sadd.s32 0, 0
    %s55 = smul.u32 16, %s54
    %p56 = scmp.eq.s32.totalorder 0, 0
    // Predicated region
    $region10: #{tpu_custom_call.1} parent=1 // pred_check
      %p57 = pneg %p56
    $region11: #{tpu_custom_call.1} parent=1 // pred_check_branch
      %59 = sbr.rel (%p57) target = $region13
    $region12: #{tpu_custom_call.1} parent=1 // pred_region
      %vm60 = vcmask 130048
      %61 = vst.msk [vmem:[#allocation2] sm:$0xff] %vm60, 0.0
    $region13: #{tpu_custom_call.1} parent=1 // pred_fallthru
      _
    %v62 = vld [vmem:[%s45] sm:$0xff]
    %v63 = vld [vmem:[%s45 + $0x8] sm:$0xff]
    %v64 = vld [vmem:[%s45 + $0x10] sm:$0xff]
    %v65 = vld [vmem:[%s45 + $0x18] sm:$0xff]
    %v66 = vld [vmem:[%s45 + $0x20] sm:$0xff]
    %v67 = vld [vmem:[%s45 + $0x28] sm:$0xff]
    %v68 = vld [vmem:[%s45 + $0x30] sm:$0xff]
    %v69 = vld [vmem:[%s45 + $0x38] sm:$0xff]
    %v70 = vld [vmem:[%s45 + $0x40] sm:$0xff]
    %v71 = vld [vmem:[%s45 + $0x48] sm:$0xff]
    %v72 = vld [vmem:[%s45 + $0x50] sm:$0xff]
    %v73 = vld [vmem:[%s45 + $0x58] sm:$0xff]
    %v74 = vld [vmem:[%s45 + $0x60] sm:$0xff]
    %v75 = vld [vmem:[%s45 + $0x68] sm:$0xff]
    %v76 = vld [vmem:[%s45 + $0x70] sm:$0xff]
    %v77 = vld [vmem:[%s45 + $0x78] sm:$0xff]
    %v78 = vld [vmem:[%s53] sm:$0xff]
    %v79 = vld [vmem:[%s53 + $0x8] sm:$0xff]
    %v80 = vld [vmem:[%s53 + $0x10] sm:$0xff]
    %v81 = vld [vmem:[%s53 + $0x18] sm:$0xff]
    %v82 = vld [vmem:[%s53 + $0x20] sm:$0xff]
    %v83 = vld [vmem:[%s53 + $0x28] sm:$0xff]
    %v84 = vld [vmem:[%s53 + $0x30] sm:$0xff]
    %v85 = vld [vmem:[%s53 + $0x38] sm:$0xff]
    %v86 = vld [vmem:[%s53 + $0x40] sm:$0xff]
    %v87 = vld [vmem:[%s53 + $0x48] sm:$0xff]
    %v88 = vld [vmem:[%s53 + $0x50] sm:$0xff]
    %v89 = vld [vmem:[%s53 + $0x58] sm:$0xff]
    %v90 = vld [vmem:[%s53 + $0x60] sm:$0xff]
    %v91 = vld [vmem:[%s53 + $0x68] sm:$0xff]
    %v92 = vld [vmem:[%s53 + $0x70] sm:$0xff]
    %v93 = vld [vmem:[%s53 + $0x78] sm:$0xff]
    %v94 = vsub.f32 %v62, %v78
    %v95 = vsub.f32 %v63, %v79
    %v96 = vsub.f32 %v64, %v80
    %v97 = vsub.f32 %v65, %v81
    %v98 = vsub.f32 %v66, %v82
    %v99 = vsub.f32 %v67, %v83
    %v100 = vsub.f32 %v68, %v84
    %v101 = vsub.f32 %v69, %v85
    %v102 = vsub.f32 %v70, %v86
    %v103 = vsub.f32 %v71, %v87
    %v104 = vsub.f32 %v72, %v88
    %v105 = vsub.f32 %v73, %v89
    %v106 = vsub.f32 %v74, %v90
    %v107 = vsub.f32 %v75, %v91
    %v108 = vsub.f32 %v76, %v92
    %v109 = vsub.f32 %v77, %v93
    %v110 = vmul.f32 %v94, %v94
    %v111 = vmul.f32 %v95, %v95
    %v112 = vmul.f32 %v96, %v96
    %v113 = vmul.f32 %v97, %v97
    %v114 = vmul.f32 %v98, %v98
    %v115 = vmul.f32 %v99, %v99
    %v116 = vmul.f32 %v100, %v100
    %v117 = vmul.f32 %v101, %v101
    %v118 = vmul.f32 %v102, %v102
    %v119 = vmul.f32 %v103, %v103
    %v120 = vmul.f32 %v104, %v104
    %v121 = vmul.f32 %v105, %v105
    %v122 = vmul.f32 %v106, %v106
    %v123 = vmul.f32 %v107, %v107
    %v124 = vmul.f32 %v108, %v108
    %v125 = vmul.f32 %v109, %v109
    %v126 = vld [vmem:[#allocation2] sm:$0xff]
    %vm127 = vcmask 130048
    %v128 = vsel %vm127, %v110, 0.0
    %v129 = vsel %vm127, %v111, 0.0
    %v130 = vadd.f32 %v128, %v129
    %v131 = vsel %vm127, %v112, 0.0
    %v132 = vadd.f32 %v130, %v131
    %v133 = vsel %vm127, %v113, 0.0
    %v134 = vadd.f32 %v132, %v133
    %v135 = vsel %vm127, %v114, 0.0
    %v136 = vadd.f32 %v134, %v135
    %v137 = vsel %vm127, %v115, 0.0
    %v138 = vadd.f32 %v136, %v137
    %v139 = vsel %vm127, %v116, 0.0
    %v140 = vadd.f32 %v138, %v139
    %v141 = vsel %vm127, %v117, 0.0
    %v142 = vadd.f32 %v140, %v141
    %v143 = vsel %vm127, %v118, 0.0
    %v144 = vadd.f32 %v142, %v143
    %v145 = vsel %vm127, %v119, 0.0
    %v146 = vadd.f32 %v144, %v145
    %v147 = vsel %vm127, %v120, 0.0
    %v148 = vadd.f32 %v146, %v147
    %v149 = vsel %vm127, %v121, 0.0
    %v150 = vadd.f32 %v148, %v149
    %v151 = vsel %vm127, %v122, 0.0
    %v152 = vadd.f32 %v150, %v151
    %v153 = vsel %vm127, %v123, 0.0
    %v154 = vadd.f32 %v152, %v153
    %v155 = vsel %vm127, %v124, 0.0
    %v156 = vadd.f32 %v154, %v155
    %v157 = vsel %vm127, %v125, 0.0
    %v158 = vadd.f32 %v156, %v157
    %v159 = vadd.f32 %v126, %v158
    %160 = vst.msk [vmem:[#allocation2] sm:$0xff] %vm127, %v159
    // Predicated region
    $region14: #{tpu_custom_call.1} parent=1 // pred_check
      _
    $region15: #{tpu_custom_call.1} parent=1 // pred_check_branch
      %162 = sbr.rel (0) target = $region17
    $region16: #{tpu_custom_call.1} parent=1 // pred_region
      %164 = vsyncadd [#allocation3], 0
      %s166 = sshll.u32 [#allocation2], 4
      %s167 = int_to_ptr.vmem [resolvable:$true] %s166
      %s168 = sshll.u32 %s2, 4
      %s169 = int_to_ptr.hbm [resolvable:$true] %s168
      %171 = dma.vmem_to_hbm [thread:$0]  %s167, 128, %s169, [#allocation3]
    $region17: #{tpu_custom_call.1} parent=1 // pred_fallthru
      _
    // Predicated region
    $region18: #{tpu_custom_call.1} parent=1 // pred_check
      _
    $region19: #{tpu_custom_call.1} parent=1 // pred_check_branch
      %173 = sbr.rel (0) target = $region21
    $region20: #{tpu_custom_call.1} parent=1 // pred_region
      %175 = dma.done [#allocation3], 128
    $region21: #{tpu_custom_call.1} parent=1 // pred_fallthru
      _
    %176 = vsyncpa [#allocation3], 1

</llo_original>
